<compile_context>
chip_gen: v7x
topology: tpu7x:2x2x1
jax: 0.10.0
libtpu: 0.0.40
codegen_flags: <defaults>
</compile_context>

<pallas_src>
import jax
import jax.numpy as jnp
from jax import lax
from jax.experimental import pallas as pl
from jax.experimental.pallas import tpu as pltpu


def _round_up(x: int, m: int) -> int:
    return ((x + m - 1) // m) * m


def _protonet_kernel(q_ref, p_ref, qn_ref, pn_ref, out_ref, acc_ref):
    """One (tn, tm) output tile, accumulating over the D (k) grid axis.

    q_ref  : (tn, tk) query tile
    p_ref  : (tm, tk) proto tile
    qn_ref : (tn, 1)  ||q||^2 per query row
    pn_ref : (1, tm)  ||p||^2 per prototype
    out_ref: (tn, tm) scores tile
    acc_ref: (tn, tm) f32 accumulator (persists across the k axis)
    """
    k = pl.program_id(2)

    @pl.when(k == 0)
    def _():
        acc_ref[...] = jnp.zeros_like(acc_ref)

    # q @ p.T on the MXU with f32 accumulation (contract on the D axis).
    acc_ref[...] += lax.dot_general(
        q_ref[...], p_ref[...],
        dimension_numbers=(((1,), (1,)), ((), ())),
        preferred_element_type=jnp.float32)

    @pl.when(k == pl.num_programs(2) - 1)
    def _():
        # scores = -(||q||^2 + ||p||^2 - 2 q.p)
        out_ref[...] = (2.0 * acc_ref[...]
                        - qn_ref[...] - pn_ref[...]).astype(out_ref.dtype)


def protonet_scores(proto, query, *, tn=256, tm=256, tk=512):
    """proto: (M, D), query: (N, D) -> scores (N, M) float32."""
    m, d = proto.shape
    n, d2 = query.shape
    assert d == d2, "feature dims of proto and query must match"

    # Shrink tiles for small problems, keeping (8, 128) alignment.
    tn = min(tn, _round_up(n, 8))
    tm = min(tm, _round_up(m, 128))
    tk = min(tk, _round_up(d, 128))

    n_pad = _round_up(n, tn)
    m_pad = _round_up(m, tm)
    d_pad = _round_up(d, tk)

    q = jnp.pad(query.astype(jnp.float32), ((0, n_pad - n), (0, d_pad - d)))
    p = jnp.pad(proto.astype(jnp.float32), ((0, m_pad - m), (0, d_pad - d)))

    # Row norms (cheap, O((N+M)*D)); consumed only in the kernel finalize step.
    qn = jnp.sum(q * q, axis=-1, keepdims=True)          # (n_pad, 1)
    pn = jnp.sum(p * p, axis=-1, keepdims=True).T        # (1, m_pad)

    grid = (n_pad // tn, m_pad // tm, d_pad // tk)

    scores_pad = pl.pallas_call(
        _protonet_kernel,
        out_shape=jax.ShapeDtypeStruct((n_pad, m_pad), jnp.float32),
        grid_spec=pltpu.PrefetchScalarGridSpec(
            num_scalar_prefetch=0,
            grid=grid,
            in_specs=[
                pl.BlockSpec((tn, tk), lambda i, j, k: (i, k)),   # query
                pl.BlockSpec((tm, tk), lambda i, j, k: (j, k)),   # proto
                pl.BlockSpec((tn, 1), lambda i, j, k: (i, 0)),    # ||q||^2
                pl.BlockSpec((1, tm), lambda i, j, k: (0, j)),    # ||p||^2
            ],
            out_specs=pl.BlockSpec((tn, tm), lambda i, j, k: (i, j)),
            scratch_shapes=[pltpu.VMEM((tn, tm), jnp.float32)],
        ),
        compiler_params=pltpu.CompilerParams(
            dimension_semantics=("parallel", "parallel", "arbitrary")),
    )(q, p, qn, pn)

    return scores_pad[:n, :m]


if __name__ == "__main__":
    key = jax.random.PRNGKey(0)
    k_proto, k_query = jax.random.split(key)

    # Small, forward-consistent shapes: 4 prototypes, 8 queries, 32-dim embeddings.
    M, N, D = 4, 8, 32
    proto = jax.random.normal(k_proto, (M, D), dtype=jnp.float32)
    query = jax.random.normal(k_query, (N, D), dtype=jnp.float32)

    scores = protonet_scores(proto, query)
    scores = jax.block_until_ready(scores)

    # Pure-JAX reference (exact broadcast form, matches torch semantics).
    diff = query[:, None, :] - proto[None, :, :]
    ref = -jnp.sum(diff * diff, axis=-1)

    assert scores.shape == (N, M)
    assert jnp.allclose(scores, ref, atol=1e-4, rtol=1e-4), "mismatch vs reference"

    print("KERNEL_OK")
</pallas_src>

<mosaic_0001>
module attributes {stable_mosaic.version = 11 : i64} {
  func.func @_protonet_kernel(%arg0: i32, %arg1: i32, %arg2: i32, %arg3: memref<8x128xf32, #tpu.memory_space<vmem>>, %arg4: memref<128x128xf32, #tpu.memory_space<vmem>>, %arg5: memref<8x1xf32, #tpu.memory_space<vmem>>, %arg6: memref<1x128xf32, #tpu.memory_space<vmem>>, %arg7: memref<8x128xf32, #tpu.memory_space<vmem>>, %arg8: memref<8x128xf32, #tpu.memory_space<vmem>>) attributes {dimension_semantics = [#tpu.dimension_semantics<parallel>, #tpu.dimension_semantics<parallel>, #tpu.dimension_semantics<arbitrary>], iteration_bounds = array<i64: 1, 1, 1>, scalar_prefetch = 0 : i64, scratch_operands = 1 : i64, tpu.core_type = #tpu.core_type<tc>, window_params = [{transform_indices = @transform_0, window_bounds = array<i64: 8, 128>}, {transform_indices = @transform_1, window_bounds = array<i64: 128, 128>}, {transform_indices = @transform_2, window_bounds = array<i64: 8, 1>}, {transform_indices = @transform_3, window_bounds = array<i64: 1, 128>}, {transform_indices = @transform_4, window_bounds = array<i64: 8, 128>}]} {
    %c0_i32 = arith.constant 0 : i32
    %0 = arith.cmpi eq, %arg2, %c0_i32 : i32
    %1 = arith.extui %0 : i1 to i32
    %c0_i32_0 = arith.constant 0 : i32
    %2 = arith.cmpi ne, %1, %c0_i32_0 : i32
    scf.if %2 {
      %cst_10 = arith.constant 0.000000e+00 : f32
      %12 = vector.broadcast %cst_10 : f32 to vector<8x128xf32>
      %c0_11 = arith.constant 0 : index
      %c0_12 = arith.constant 0 : index
      %13 = vector.load %arg8[%c0_11, %c0_12] : memref<8x128xf32, #tpu.memory_space<vmem>>, vector<8x128xf32>
      tpu.vector_store %arg8[%c0_11, %c0_12], %12 {strides = array<i32>} : memref<8x128xf32, #tpu.memory_space<vmem>>, vector<8x128xf32>,
    } else {
    }
    %c0 = arith.constant 0 : index
    %c0_1 = arith.constant 0 : index
    %3 = vector.load %arg8[%c0, %c0_1] : memref<8x128xf32, #tpu.memory_space<vmem>>, vector<8x128xf32>
    %c0_2 = arith.constant 0 : index
    %c0_3 = arith.constant 0 : index
    %4 = vector.load %arg3[%c0_2, %c0_3] : memref<8x128xf32, #tpu.memory_space<vmem>>, vector<8x128xf32>
    %c0_4 = arith.constant 0 : index
    %c0_5 = arith.constant 0 : index
    %5 = vector.load %arg4[%c0_4, %c0_5] : memref<128x128xf32, #tpu.memory_space<vmem>>, vector<128x128xf32>
    %cst = arith.constant dense<0.000000e+00> : vector<8x128xf32>
    %6 = tpu.matmul %4, %5, %cst {dimension_numbers = #tpu.dot_dimension_numbers<[1], [1], [0], [0], [0, 0, 1, 0], [], []>} : vector<8x128xf32>, vector<128x128xf32>, vector<8x128xf32> -> vector<8x128xf32>
    %7 = arith.addf %3, %6 : vector<8x128xf32>
    %c0_6 = arith.constant 0 : index
    %c0_7 = arith.constant 0 : index
    %8 = vector.load %arg8[%c0_6, %c0_7] : memref<8x128xf32, #tpu.memory_space<vmem>>, vector<8x128xf32>
    tpu.vector_store %arg8[%c0_6, %c0_7], %7 {strides = array<i32>} : memref<8x128xf32, #tpu.memory_space<vmem>>, vector<8x128xf32>,
    %c0_i32_8 = arith.constant 0 : i32
    %9 = arith.cmpi eq, %arg2, %c0_i32_8 : i32
    %10 = arith.extui %9 : i1 to i32
    %c0_i32_9 = arith.constant 0 : i32
    %11 = arith.cmpi ne, %10, %c0_i32_9 : i32
    scf.if %11 {
      %c0_10 = arith.constant 0 : index
      %c0_11 = arith.constant 0 : index
      %12 = vector.load %arg8[%c0_10, %c0_11] : memref<8x128xf32, #tpu.memory_space<vmem>>, vector<8x128xf32>
      %cst_12 = arith.constant 2.000000e+00 : f32
      %13 = vector.broadcast %cst_12 : f32 to vector<8x128xf32>
      %14 = arith.mulf %13, %12 : vector<8x128xf32>
      %c0_13 = arith.constant 0 : index
      %c0_14 = arith.constant 0 : index
      %15 = vector.load %arg5[%c0_13, %c0_14] : memref<8x1xf32, #tpu.memory_space<vmem>>, vector<8x1xf32>
      %16 = vector.broadcast %15 : vector<8x1xf32> to vector<8x128xf32>
      %17 = arith.subf %14, %16 : vector<8x128xf32>
      %c0_15 = arith.constant 0 : index
      %c0_16 = arith.constant 0 : index
      %18 = vector.load %arg6[%c0_15, %c0_16] : memref<1x128xf32, #tpu.memory_space<vmem>>, vector<1x128xf32>
      %19 = vector.broadcast %18 : vector<1x128xf32> to vector<8x128xf32>
      %20 = arith.subf %17, %19 : vector<8x128xf32>
      %c0_17 = arith.constant 0 : index
      %c0_18 = arith.constant 0 : index
      %21 = vector.load %arg7[%c0_17, %c0_18] : memref<8x128xf32, #tpu.memory_space<vmem>>, vector<8x128xf32>
      tpu.vector_store %arg7[%c0_17, %c0_18], %20 {strides = array<i32>} : memref<8x128xf32, #tpu.memory_space<vmem>>, vector<8x128xf32>,
    } else {
    }
    return
  }
  func.func @transform_0(%arg0: i32, %arg1: i32, %arg2: i32) -> (i32, i32) {
    %c0_i32 = arith.constant 0 : i32
    return %arg0, %arg2 : i32, i32
  }
  func.func @transform_1(%arg0: i32, %arg1: i32, %arg2: i32) -> (i32, i32) {
    %c0_i32 = arith.constant 0 : i32
    return %arg1, %arg2 : i32, i32
  }
  func.func @transform_2(%arg0: i32, %arg1: i32, %arg2: i32) -> (i32, i32) {
    %c0_i32 = arith.constant 0 : i32
    %c0_i32_0 = arith.constant 0 : i32
    return %arg0, %c0_i32 : i32, i32
  }
  func.func @transform_3(%arg0: i32, %arg1: i32, %arg2: i32) -> (i32, i32) {
    %c0_i32 = arith.constant 0 : i32
    %c0_i32_0 = arith.constant 0 : i32
    return %c0_i32, %arg1 : i32, i32
  }
  func.func @transform_4(%arg0: i32, %arg1: i32, %arg2: i32) -> (i32, i32) {
    %c0_i32 = arith.constant 0 : i32
    return %arg0, %arg1 : i32, i32
  }
}

</mosaic_0001>

<llo_original>
// kernel: tpu_custom_call.1
$region0: #{tpu_custom_call.1}
  #allocation0 [shape = 'u32[]', space=smem, size = 0x4, offset = 0x4, fixed_abs, tag = 'smem constant byte address 0x4 - core index']
  #allocation1 [shape = 'u32[144,128]{1,0:T(1,128)}', space=vmem, size = 0x12000, scoped, tag = 'internal scratch']
  #allocation2 [shape = 'f32[8,128]{1,0:T(8,128)}', space=vmem, size = 0x1000, scoped, tag = 'scratch operand']
  %s0 = inlined_call_operand.vmem [shape: f32[8,128], index: 0, kind: input, shape index: {}]
  %s1 = inlined_call_operand.hbm [shape: f32[128,128], index: 1, kind: input, shape index: {}]
  %s2 = inlined_call_operand.vmem [shape: f32[8,1], index: 2, kind: input, shape index: {}]
  %s3 = inlined_call_operand.vmem [shape: f32[1,128], index: 3, kind: input, shape index: {}]
  %s4 = inlined_call_operand.hbm [shape: f32[8,128], index: 4, kind: output, shape index: {}]
  %s5 = sld [smem:[#allocation0]]
  $region38: #{tpu_custom_call.1} parent=0
    _
  %s7 = ssub.s32 1, %s5
  %s8 = scalar_select 0, %s7, %s5
  $region1: #{tpu_custom_call.1} parent=0
    #allocation3 [shape = 'u8[65536]{0}', space=vmem, size = 0x10000, scoped, tag = 'input window, operand 1, single buffered']
    #allocation4 [shape = 's32[1]{0}', space=sflag, size = 0x4, scoped, tag = 'scoped memory for tpu_custom_call.1']
    #allocation5 [shape = 's32[1]{0}', space=sflag, size = 0x4, scoped, tag = 'scoped memory for tpu_custom_call.1']
    #allocation6 [shape = 'u8[4096]{0}', space=vmem, size = 0x1000, scoped, tag = 'output window, operand 0, single buffered']
    %9 = vsyncpa [#allocation4], 0
    %10 = vsyncpa [#allocation5], 0
    // Predicated region
    $region2: #{tpu_custom_call.1} parent=1 // pred_check
      _
    $region3: #{tpu_custom_call.1} parent=1 // pred_check_branch
      %12 = sbr.rel (0) target = $region5
    $region4: #{tpu_custom_call.1} parent=1 // pred_region
      _
    $region5: #{tpu_custom_call.1} parent=1 // pred_fallthru
      _
    // Predicated region
    $region6: #{tpu_custom_call.1} parent=1 // pred_check
      _
    $region7: #{tpu_custom_call.1} parent=1 // pred_check_branch
      %14 = sbr.rel (0) target = $region9
    $region8: #{tpu_custom_call.1} parent=1 // pred_region
      %s16 = ssub.s32 2048, 2048
      %17 = vsyncadd [#allocation4], %s16
      %s18 = sshll.u32 [#allocation3], 4
      %s19 = int_to_ptr.vmem [resolvable:$true] %s18
      %24 = dma.hbm_to_vmem [thread:$0]  %s1, 2048, %s19, [#allocation4], 128, 128, 8
    $region9: #{tpu_custom_call.1} parent=1 // pred_fallthru
      _
    // Predicated region
    $region10: #{tpu_custom_call.1} parent=1 // pred_check
      _
    $region11: #{tpu_custom_call.1} parent=1 // pred_check_branch
      %26 = sbr.rel (0) target = $region13
    $region12: #{tpu_custom_call.1} parent=1 // pred_region
      _
    $region13: #{tpu_custom_call.1} parent=1 // pred_fallthru
      _
    // Predicated region
    $region14: #{tpu_custom_call.1} parent=1 // pred_check
      _
    $region15: #{tpu_custom_call.1} parent=1 // pred_check_branch
      %28 = sbr.rel (0) target = $region17
    $region16: #{tpu_custom_call.1} parent=1 // pred_region
      _
    $region17: #{tpu_custom_call.1} parent=1 // pred_fallthru
      _
    // Predicated region
    $region18: #{tpu_custom_call.1} parent=1 // pred_check
      _
    $region19: #{tpu_custom_call.1} parent=1 // pred_check_branch
      %30 = sbr.rel (0) target = $region21
    $region20: #{tpu_custom_call.1} parent=1 // pred_region
      %31 = dma.done [#allocation4], 2048
    $region21: #{tpu_custom_call.1} parent=1 // pred_fallthru
      _
    %p32 = scmp.eq.s32.totalorder 0, 0
    // Predicated region
    $region22: #{tpu_custom_call.1} parent=1 // pred_check
      %p33 = pneg %p32
    $region23: #{tpu_custom_call.1} parent=1 // pred_check_branch
      %35 = sbr.rel (%p33) target = $region25
    $region24: #{tpu_custom_call.1} parent=1 // pred_region
      %36 = vst [vmem:[#allocation2] sm:$0xff] 0.0
    $region25: #{tpu_custom_call.1} parent=1 // pred_fallthru
      _
    %v37 = vld [vmem:[#allocation2] sm:$0xff]
    %v38 = vld [vmem:[%s0] sm:$0xff]
    %v39 = vld [vmem:[#allocation3] sm:$0xff]
    %v40 = vld [vmem:[#allocation3 + $0x8] sm:$0xff]
    %v41 = vld [vmem:[#allocation3 + $0x10] sm:$0xff]
    %v42 = vld [vmem:[#allocation3 + $0x18] sm:$0xff]
    %v43 = vld [vmem:[#allocation3 + $0x20] sm:$0xff]
    %v44 = vld [vmem:[#allocation3 + $0x28] sm:$0xff]
    %v45 = vld [vmem:[#allocation3 + $0x30] sm:$0xff]
    %v46 = vld [vmem:[#allocation3 + $0x38] sm:$0xff]
    %v47 = vld [vmem:[#allocation3 + $0x40] sm:$0xff]
    %v48 = vld [vmem:[#allocation3 + $0x48] sm:$0xff]
    %v49 = vld [vmem:[#allocation3 + $0x50] sm:$0xff]
    %v50 = vld [vmem:[#allocation3 + $0x58] sm:$0xff]
    %v51 = vld [vmem:[#allocation3 + $0x60] sm:$0xff]
    %v52 = vld [vmem:[#allocation3 + $0x68] sm:$0xff]
    %v53 = vld [vmem:[#allocation3 + $0x70] sm:$0xff]
    %v54 = vld [vmem:[#allocation3 + $0x78] sm:$0xff]
    %55 = vmatprep.subr.mxu0 0.0
    %56 = vmatpush1.xpose.msra.mxu0 %v39
    %57 = vmatprep.subr.mxu0 0.0
    %58 = vmatpush1.xpose.msra.mxu0 %v40
    %59 = vmatprep.subr.mxu0 0.0
    %60 = vmatpush1.xpose.msra.mxu0 %v41
    %61 = vmatprep.subr.mxu0 0.0
    %62 = vmatpush1.xpose.msra.mxu0 %v42
    %63 = vmatprep.subr.mxu0 0.0
    %64 = vmatpush1.xpose.msra.mxu0 %v43
    %65 = vmatprep.subr.mxu0 0.0
    %66 = vmatpush1.xpose.msra.mxu0 %v44
    %67 = vmatprep.subr.mxu0 0.0
    %68 = vmatpush1.xpose.msra.mxu0 %v45
    %69 = vmatprep.subr.mxu0 0.0
    %70 = vmatpush1.xpose.msra.mxu0 %v46
    %71 = vmatprep.subr.mxu0 0.0
    %72 = vmatpush1.xpose.msra.mxu0 %v47
    %73 = vmatprep.subr.mxu0 0.0
    %74 = vmatpush1.xpose.msra.mxu0 %v48
    %75 = vmatprep.subr.mxu0 0.0
    %76 = vmatpush1.xpose.msra.mxu0 %v49
    %77 = vmatprep.subr.mxu0 0.0
    %78 = vmatpush1.xpose.msra.mxu0 %v50
    %79 = vmatprep.subr.mxu0 0.0
    %80 = vmatpush1.xpose.msra.mxu0 %v51
    %81 = vmatprep.subr.mxu0 0.0
    %82 = vmatpush1.xpose.msra.mxu0 %v52
    %83 = vmatprep.subr.mxu0 0.0
    %84 = vmatpush1.xpose.msra.mxu0 %v53
    %85 = vmatprep.subr.mxu0 0.0
    %86 = vmatpush1.xpose.msra.mxu0 %v54
    %87 = vmatprep.subr.mxu0 0.0
    %88 = vmatpush1.xpose.msra.mxu0 0.0
    %89 = vmatprep.subr.mxu0 0.0
    %90 = vmatpush1.xpose.msra.mxu0 0.0
    %91 = vmatprep.subr.mxu0 0.0
    %92 = vmatpush1.xpose.msra.mxu0 0.0
    %93 = vmatprep.subr.mxu0 0.0
    %94 = vmatpush1.xpose.msra.mxu0 0.0
    %95 = vmatprep.subr.mxu0 0.0
    %96 = vmatpush1.xpose.msra.mxu0 0.0
    %97 = vmatprep.subr.mxu0 0.0
    %98 = vmatpush1.xpose.msra.mxu0 0.0
    %99 = vmatprep.subr.mxu0 0.0
    %100 = vmatpush1.xpose.msra.mxu0 0.0
    %101 = vmatprep.subr.mxu0 0.0
    %102 = vmatpush1.xpose.msra.mxu0 0.0
    %103 = vmatprep.subr.mxu0 0.0
    %104 = vmatpush1.xpose.msra.mxu0 0.0
    %105 = vmatprep.subr.mxu0 0.0
    %106 = vmatpush1.xpose.msra.mxu0 0.0
    %107 = vmatprep.subr.mxu0 0.0
    %108 = vmatpush1.xpose.msra.mxu0 0.0
    %109 = vmatprep.subr.mxu0 0.0
    %110 = vmatpush1.xpose.msra.mxu0 0.0
    %111 = vmatprep.subr.mxu0 0.0
    %112 = vmatpush1.xpose.msra.mxu0 0.0
    %113 = vmatprep.subr.mxu0 0.0
    %114 = vmatpush1.xpose.msra.mxu0 0.0
    %115 = vmatprep.subr.mxu0 0.0
    %116 = vmatpush1.xpose.msra.mxu0 0.0
    %117 = vmatprep.subr.mxu0 0.0
    %118 = vmatpush1.xpose.msra.mxu0 0.0
    %119 = vmatprep.mubr.f32.mxu0 0.0
    %120 = vmatmul.mubr.f32.gmra.mrb[0].mxu0 %v38
    %v121 = vpop.f32.mrb[0].mxu0
    %v122 = vadd.f32 0.0, %v121
    %v123 = vpop.f32.mrb[0].mxu0
    %124 = vdwg.mxu0
    %v125 = vadd.f32 %v37, %v122
    %126 = vst [vmem:[#allocation2] sm:$0xff] %v125
    // Predicated region
    $region26: #{tpu_custom_call.1} parent=1 // pred_check
      %p127 = pneg %p32
    $region27: #{tpu_custom_call.1} parent=1 // pred_check_branch
      %129 = sbr.rel (%p127) target = $region29
    $region28: #{tpu_custom_call.1} parent=1 // pred_region
      %v130 = vld [vmem:[#allocation2] sm:$0xff]
      %v131 = vmul.f32 %v130, 2.0
      %v132 = vld [vmem:[%s2] sm:$0xff]
      %134 = vset.pattern.permute.xlu0 0
      %135 = vperm.xlu0 %134, %v132
      %v136 = vpop.permute.xlu0 %135
      %v138 = vsub.f32 %v131, %v136
      %v139 = vld [vmem:[%s3] sm:$0x1]
      %v141 = vlaneseq
      %v142 = vshrl.u32 %v141, 7
      %v143 = vsub.s32 0, %v142
      %v144 = vrot.slane %v139, %v143
      %v146 = vsub.f32 %v138, %v144
      %147 = vst [vmem:[#allocation6] sm:$0xff] %v146
    $region29: #{tpu_custom_call.1} parent=1 // pred_fallthru
      _
    // Predicated region
    $region30: #{tpu_custom_call.1} parent=1 // pred_check
      _
    $region31: #{tpu_custom_call.1} parent=1 // pred_check_branch
      %149 = sbr.rel (0) target = $region33
    $region32: #{tpu_custom_call.1} parent=1 // pred_region
      %s151 = ssub.s32 128, 128
      %152 = vsyncadd [#allocation5], %s151
      %s154 = sshll.u32 [#allocation6], 4
      %s155 = int_to_ptr.vmem [resolvable:$true] %s154
      %157 = dma.vmem_to_hbm [thread:$0]  %s155, 128, %s4, [#allocation5]
    $region33: #{tpu_custom_call.1} parent=1 // pred_fallthru
      _
    // Predicated region
    $region34: #{tpu_custom_call.1} parent=1 // pred_check
      _
    $region35: #{tpu_custom_call.1} parent=1 // pred_check_branch
      %159 = sbr.rel (0) target = $region37
    $region36: #{tpu_custom_call.1} parent=1 // pred_region
      %160 = dma.done [#allocation5], 128
    $region37: #{tpu_custom_call.1} parent=1 // pred_fallthru
      _
    %161 = vsyncpa [#allocation4], 1
    %162 = vsyncpa [#allocation5], 1

</llo_original>
